<compile_context>
chip_gen: v6e
topology: v6e:2x2x1
jax: 0.10.0
libtpu: 0.0.40
codegen_flags: <defaults>
</compile_context>

<pallas_src>
import functools

import jax
import jax.numpy as jnp
from jax import lax
from jax.experimental import pallas as pl
from jax.experimental.pallas import tpu as pltpu


def _pick_tile(size, target):
    """Largest tile <= target that divides `size` and is a multiple of 8;
    falls back to the full dim (always a legal BlockSpec block)."""
    if size <= target:
        return size
    t = target
    while t >= 8:
        if size % t == 0 and t % 8 == 0:
            return t
        t //= 2
    return size


# --------------------------- Phase 1: QKV projection -------------------------

def _qkv_proj_kernel(x_ref, wq_ref, bq_ref, wk_ref, bk_ref, wv_ref, bv_ref,
                     q_ref, k_ref, v_ref, *, scaling):
    """Fused Q/K/V projection for one (batch, seq-tile) block.

    Weights arrive pre-transposed ([in, out]) so y = x @ W + b directly.
    Outputs keep the lane-dense [TS, E] layout (no per-head D<128 stores).
    The 1/sqrt(head_dim) scale is folded into q here (S*E multiplies total).
    """
    x = x_ref[0]                                                     # [TS, E]
    q = jnp.dot(x, wq_ref[...], preferred_element_type=jnp.float32) + bq_ref[0]
    q_ref[0] = (q * scaling).astype(q_ref.dtype)
    k = jnp.dot(x, wk_ref[...], preferred_element_type=jnp.float32) + bk_ref[0]
    k_ref[0] = k.astype(k_ref.dtype)
    v = jnp.dot(x, wv_ref[...], preferred_element_type=jnp.float32) + bv_ref[0]
    v_ref[0] = v.astype(v_ref.dtype)


# ------------------ Phase 2: causal attention + output proj ------------------

def _attn_out_kernel(q_ref, k_ref, v_ref, wo_ref, bo_ref, out_ref, *rest,
                     num_heads, head_dim, compute_dtype, bf16_exp):
    """One (batch, query-tile) step: all heads, causal softmax, fused out-proj.

    q_ref: (1, TQ, E) pre-scaled.  k_ref/v_ref: (1, S, E).  wo_ref: (E, E).
    Optional attn_ref: (1, H, TQ, S).  ctx_ref: (TQ, E) fp32 VMEM scratch used
    to assemble the per-head contexts for a single big-K output projection.
    """
    if len(rest) == 2:
        attn_ref, ctx_ref = rest
    else:
        (ctx_ref,) = rest
        attn_ref = None

    TQ = q_ref.shape[1]
    S = k_ref.shape[1]

    # Causal mask for this query tile only ([TQ, S], not [S, S]); computed once
    # per grid step and reused by every head.
    q0 = pl.program_id(1) * TQ
    rows = lax.broadcasted_iota(jnp.int32, (TQ, S), 0) + q0
    cols = lax.broadcasted_iota(jnp.int32, (TQ, S), 1)
    causal = cols <= rows

    for h in range(num_heads):                       # static unroll over heads
        sl = slice(h * head_dim, (h + 1) * head_dim)
        qh = q_ref[0, :, sl]                                         # [TQ, D]
        kh = k_ref[0, :, sl]                                         # [S,  D]
        vh = v_ref[0, :, sl]                                         # [S,  D]

        # scores = q @ k^T, contracting last dims (no K transpose materialized)
        s = lax.dot_general(qh, kh, (((1,), (1,)), ((), ())),
                            preferred_element_type=jnp.float32)      # [TQ, S]
        s = jnp.where(causal, s, -1e30)              # finite; exp underflows to 0

        m = jnp.max(s, axis=-1, keepdims=True)
        z = s - m
        if bf16_exp:
            # bf16 EUP path (v6e/v7x); keep False on v5e.
            e = jnp.exp(z.astype(jnp.bfloat16)).astype(jnp.float32)
        else:
            e = jnp.exp(z)
        denom = jnp.sum(e, axis=-1, keepdims=True)

        if attn_ref is not None:
            p = e / denom                            # exact: stored rows sum to 1
            attn_ref[0, h] = p.astype(attn_ref.dtype)
        else:
            p = e * pl.reciprocal(denom, approx=True)   # EUP slot, ~free

        ctx_h = jnp.dot(p.astype(compute_dtype), vh,
                        preferred_element_type=jnp.float32)          # [TQ, D]
        ctx_ref[:, sl] = ctx_h

    # Deferred output projection: one big-K matmul per step instead of H
    # small K=D matmuls with per-head fp32 read-modify-write.
    ctx = ctx_ref[...].astype(compute_dtype)                         # [TQ, E]
    out = jnp.dot(ctx, wo_ref[...],
                  preferred_element_type=jnp.float32) + bo_ref[0]
    out_ref[0] = out.astype(out_ref.dtype)


# --------------------------------- wrapper -----------------------------------

def prepare_params(params, compute_dtype=jnp.float32):
    """One-time host-side parameter prep: transpose Linear weights
    ([out,in] -> [in,out]) and cast matmul operands to the compute dtype.
    Call once outside the per-step jit (hoists the transpose/cast)."""
    wq, bq, wk, bk, wv, bv, wo, bo = params
    ws = tuple(jnp.asarray(w).T.astype(compute_dtype) for w in (wq, wk, wv, wo))
    bs = tuple(jnp.asarray(b).reshape(1, -1).astype(jnp.float32)
               for b in (bq, bk, bv, bo))
    return ws + bs   # (wq_t, wk_t, wv_t, wo_t, bq2, bk2, bv2, bo2)


def diagonal_masked_attention(hidden_states, prepared_params, *, num_heads,
                              output_attentions=True,
                              attn_dtype=jnp.float32,
                              bf16_exp=False,
                              seq_tile=512, q_tile=256,
                              vmem_limit_bytes=None):
    """hidden_states: [B, S, E].  Returns (output [B,S,E], attn or None).

    The matmul compute dtype is inferred from the prepared weights (bf16
    recommended in production: fp32 MXU accumulation, fp32 softmax path).
    """
    wq_t, wk_t, wv_t, wo_t, bq2, bk2, bv2, bo2 = prepared_params
    compute_dtype = wq_t.dtype
    B, S, E = hidden_states.shape
    D = E // num_heads
    assert D * num_heads == E, "embed_dim must be divisible by num_heads"
    scaling = float(D) ** -0.5

    x_c = hidden_states.astype(compute_dtype)
    TS = _pick_tile(S, seq_tile)
    TQ = _pick_tile(S, q_tile)

    cp_kwargs = {}
    if vmem_limit_bytes is not None:
        cp_kwargs["vmem_limit_bytes"] = vmem_limit_bytes

    # ---- Phase 1: fused QKV projection, grid over (batch, seq tiles) ----
    w_spec = pl.BlockSpec((E, E), lambda b, t: (0, 0))
    b_spec = pl.BlockSpec((1, E), lambda b, t: (0, 0))
    seq_spec = pl.BlockSpec((1, TS, E), lambda b, t: (b, t, 0))

    qkv_kernel = functools.partial(_qkv_proj_kernel, scaling=scaling)
    q_l, k_l, v_l = pl.pallas_call(
        qkv_kernel,
        out_shape=tuple(jax.ShapeDtypeStruct((B, S, E), compute_dtype)
                        for _ in range(3)),
        grid_spec=pltpu.PrefetchScalarGridSpec(
            num_scalar_prefetch=0,
            grid=(B, S // TS),
            in_specs=[seq_spec,
                      w_spec, b_spec,     # q_proj
                      w_spec, b_spec,     # k_proj
                      w_spec, b_spec],    # v_proj
            out_specs=[seq_spec, seq_spec, seq_spec]),
        compiler_params=pltpu.CompilerParams(
            dimension_semantics=("parallel", "parallel"), **cp_kwargs),
    )(x_c, wq_t, bq2, wk_t, bk2, wv_t, bv2)

    # ---- Phase 2: causal attention (all heads) + fused output projection ----
    attn_kernel = functools.partial(
        _attn_out_kernel, num_heads=num_heads, head_dim=D,
        compute_dtype=compute_dtype, bf16_exp=bf16_exp)

    out_shapes = [jax.ShapeDtypeStruct((B, S, E), hidden_states.dtype)]
    out_specs = [pl.BlockSpec((1, TQ, E), lambda b, qi: (b, qi, 0))]
    if output_attentions:
        out_shapes.append(
            jax.ShapeDtypeStruct((B, num_heads, S, S), attn_dtype))
        out_specs.append(
            pl.BlockSpec((1, num_heads, TQ, S), lambda b, qi: (b, 0, qi, 0)))

    results = pl.pallas_call(
        attn_kernel,
        out_shape=tuple(out_shapes),
        grid_spec=pltpu.PrefetchScalarGridSpec(
            num_scalar_prefetch=0,
            grid=(B, S // TQ),
            in_specs=[pl.BlockSpec((1, TQ, E), lambda b, qi: (b, qi, 0)),  # q
                      pl.BlockSpec((1, S, E), lambda b, qi: (b, 0, 0)),    # k
                      pl.BlockSpec((1, S, E), lambda b, qi: (b, 0, 0)),    # v
                      pl.BlockSpec((E, E), lambda b, qi: (0, 0)),          # wo
                      pl.BlockSpec((1, E), lambda b, qi: (0, 0))],         # bo
            out_specs=out_specs,
            scratch_shapes=[pltpu.VMEM((TQ, E), jnp.float32)]),  # ctx assembly
        compiler_params=pltpu.CompilerParams(
            dimension_semantics=("parallel", "parallel"), **cp_kwargs),
    )(q_l, k_l, v_l, wo_t, bo2)

    out = results[0]
    attn = results[1] if output_attentions else None
    return out, attn


# ---------------------------- reference & test --------------------------------

def init_params(key, embed_dim):
    """Deterministic parameter init (Linear weights [out, in], biases [out])."""
    keys = jax.random.split(key, 8)
    scale = 1.0 / (embed_dim ** 0.5)
    def w(k):
        return jax.random.normal(k, (embed_dim, embed_dim), jnp.float32) * scale
    def b(k):
        return jax.random.normal(k, (embed_dim,), jnp.float32) * 0.01
    return (w(keys[0]), b(keys[1]),   # q
            w(keys[2]), b(keys[3]),   # k
            w(keys[4]), b(keys[5]),   # v
            w(keys[6]), b(keys[7]))   # out


def reference(hidden_states, params, *, num_heads):
    """Pure-JAX reference of the eval-mode PyTorch forward."""
    B, S, E = hidden_states.shape
    D = E // num_heads
    wq, bq, wk, bk, wv, bv, wo, bo = params
    def proj(w, b):
        return (hidden_states @ w.T + b).reshape(B, S, num_heads, D).transpose(0, 2, 1, 3)
    q, k, v = proj(wq, bq), proj(wk, bk), proj(wv, bv)
    s = jnp.einsum("bhqd,bhkd->bhqk", q, k) * (D ** -0.5)
    mask = jnp.tril(jnp.ones((S, S)))
    s = jnp.where(mask == 0, -jnp.inf, s)
    p = jax.nn.softmax(s, axis=-1)
    ctx = jnp.einsum("bhqk,bhkd->bhqd", p, v).transpose(0, 2, 1, 3).reshape(B, S, E)
    return ctx @ wo.T + bo, p


if __name__ == "__main__":
    B, S, E, H = 2, 8, 32, 4

    key = jax.random.PRNGKey(0)
    k_x, k_p = jax.random.split(key)
    x = jax.random.normal(k_x, (B, S, E), jnp.float32)
    params = init_params(k_p, E)

    ref_out, ref_attn = reference(x, params, num_heads=H)

    # 1) fp32 matmul operands + fp32 stored probabilities (tight numeric check).
    prep32 = prepare_params(params, jnp.float32)
    out, attn = diagonal_masked_attention(x, prep32, num_heads=H,
                                          output_attentions=True)
    out, attn = jax.block_until_ready((out, attn))
    assert jnp.allclose(out, ref_out, atol=5e-3, rtol=5e-3), "fp32 output mismatch"
    assert jnp.allclose(attn, ref_attn, atol=2e-3, rtol=5e-3), "fp32 attn mismatch"

    # 2) Production fast path: bf16 MXU operands, bf16 exp (EUP), bf16 stored
    #    probabilities.  Loose tolerances (sanity check only).
    prep_bf = prepare_params(params, jnp.bfloat16)
    out_bf, attn_bf = diagonal_masked_attention(
        x, prep_bf, num_heads=H, output_attentions=True,
        attn_dtype=jnp.bfloat16, bf16_exp=True)
    out_bf, attn_bf = jax.block_until_ready((out_bf, attn_bf))
    assert bool(jnp.all(jnp.isfinite(out_bf)))
    assert jnp.allclose(out_bf, ref_out, atol=2e-1, rtol=1e-1), "bf16 output mismatch"
    assert jnp.allclose(attn_bf.astype(jnp.float32), ref_attn, atol=1e-1), \
        "bf16 attn mismatch"

    # 3) No-probs path (output_attentions=False -> no [B,H,S,S] HBM writeback).
    out_np, attn_np = diagonal_masked_attention(
        x, prep_bf, num_heads=H, output_attentions=False, bf16_exp=True)
    out_np = jax.block_until_ready(out_np)
    assert attn_np is None
    assert jnp.allclose(out_np, ref_out, atol=2e-1, rtol=1e-1), "no-attn output mismatch"

    print("KERNEL_OK")
</pallas_src>

<mosaic_0001>
module attributes {stable_mosaic.version = 11 : i64} {
  func.func @_qkv_proj_kernel(%arg0: i32, %arg1: i32, %arg2: memref<1x8x32xf32, #tpu.memory_space<vmem>>, %arg3: memref<32x32xf32, #tpu.memory_space<vmem>>, %arg4: memref<1x32xf32, #tpu.memory_space<vmem>>, %arg5: memref<32x32xf32, #tpu.memory_space<vmem>>, %arg6: memref<1x32xf32, #tpu.memory_space<vmem>>, %arg7: memref<32x32xf32, #tpu.memory_space<vmem>>, %arg8: memref<1x32xf32, #tpu.memory_space<vmem>>, %arg9: memref<1x8x32xf32, #tpu.memory_space<vmem>>, %arg10: memref<1x8x32xf32, #tpu.memory_space<vmem>>, %arg11: memref<1x8x32xf32, #tpu.memory_space<vmem>>) attributes {dimension_semantics = [#tpu.dimension_semantics<parallel>, #tpu.dimension_semantics<parallel>], iteration_bounds = array<i64: 2, 1>, scalar_prefetch = 0 : i64, scratch_operands = 0 : i64, tpu.core_type = #tpu.core_type<tc>, window_params = [{transform_indices = @transform_0, window_bounds = array<i64: 1, 8, 32>}, {pipeline_mode = #tpu.pipeline_mode<synchronous>, transform_indices = @transform_1, window_bounds = array<i64: 32, 32>}, {pipeline_mode = #tpu.pipeline_mode<synchronous>, transform_indices = @transform_2, window_bounds = array<i64: 1, 32>}, {pipeline_mode = #tpu.pipeline_mode<synchronous>, transform_indices = @transform_3, window_bounds = array<i64: 32, 32>}, {pipeline_mode = #tpu.pipeline_mode<synchronous>, transform_indices = @transform_4, window_bounds = array<i64: 1, 32>}, {pipeline_mode = #tpu.pipeline_mode<synchronous>, transform_indices = @transform_5, window_bounds = array<i64: 32, 32>}, {pipeline_mode = #tpu.pipeline_mode<synchronous>, transform_indices = @transform_6, window_bounds = array<i64: 1, 32>}, {transform_indices = @transform_7, window_bounds = array<i64: 1, 8, 32>}, {transform_indices = @transform_8, window_bounds = array<i64: 1, 8, 32>}, {transform_indices = @transform_9, window_bounds = array<i64: 1, 8, 32>}]} {
    %c0 = arith.constant 0 : index
    %c0_0 = arith.constant 0 : index
    %c0_1 = arith.constant 0 : index
    %0 = vector.load %arg2[%c0, %c0_0, %c0_1] : memref<1x8x32xf32, #tpu.memory_space<vmem>>, vector<1x8x32xf32>
    %1 = vector.shape_cast %0 : vector<1x8x32xf32> to vector<8x32xf32>
    %c0_2 = arith.constant 0 : index
    %c0_3 = arith.constant 0 : index
    %2 = vector.load %arg3[%c0_2, %c0_3] : memref<32x32xf32, #tpu.memory_space<vmem>>, vector<32x32xf32>
    %cst = arith.constant dense<0.000000e+00> : vector<8x32xf32>
    %3 = tpu.matmul %1, %2, %cst {dimension_numbers = #tpu.dot_dimension_numbers<[1], [0], [0], [1], [0, 0, 1, 1], [], []>} : vector<8x32xf32>, vector<32x32xf32>, vector<8x32xf32> -> vector<8x32xf32>
    %c0_4 = arith.constant 0 : index
    %c0_5 = arith.constant 0 : index
    %4 = vector.load %arg4[%c0_4, %c0_5] : memref<1x32xf32, #tpu.memory_space<vmem>>, vector<1x32xf32>
    %5 = vector.shape_cast %4 : vector<1x32xf32> to vector<32xf32>
    %6 = vector.shape_cast %5 : vector<32xf32> to vector<1x32xf32>
    %7 = vector.broadcast %6 : vector<1x32xf32> to vector<8x32xf32>
    %8 = arith.addf %3, %7 : vector<8x32xf32>
    %cst_6 = arith.constant 0.353553385 : f32
    %9 = vector.broadcast %cst_6 : f32 to vector<8x32xf32>
    %10 = arith.mulf %8, %9 : vector<8x32xf32>
    %c0_7 = arith.constant 0 : index
    %c0_8 = arith.constant 0 : index
    %c0_9 = arith.constant 0 : index
    %11 = vector.load %arg9[%c0_7, %c0_8, %c0_9] : memref<1x8x32xf32, #tpu.memory_space<vmem>>, vector<1x8x32xf32>
    %12 = vector.shape_cast %11 : vector<1x8x32xf32> to vector<8x32xf32>
    %13 = vector.shape_cast %10 : vector<8x32xf32> to vector<1x8x32xf32>
    tpu.vector_store %arg9[%c0_7, %c0_8, %c0_9], %13 {strides = array<i32>} : memref<1x8x32xf32, #tpu.memory_space<vmem>>, vector<1x8x32xf32>,
    %c0_10 = arith.constant 0 : index
    %c0_11 = arith.constant 0 : index
    %14 = vector.load %arg5[%c0_10, %c0_11] : memref<32x32xf32, #tpu.memory_space<vmem>>, vector<32x32xf32>
    %cst_12 = arith.constant dense<0.000000e+00> : vector<8x32xf32>
    %15 = tpu.matmul %1, %14, %cst_12 {dimension_numbers = #tpu.dot_dimension_numbers<[1], [0], [0], [1], [0, 0, 1, 1], [], []>} : vector<8x32xf32>, vector<32x32xf32>, vector<8x32xf32> -> vector<8x32xf32>
    %c0_13 = arith.constant 0 : index
    %c0_14 = arith.constant 0 : index
    %16 = vector.load %arg6[%c0_13, %c0_14] : memref<1x32xf32, #tpu.memory_space<vmem>>, vector<1x32xf32>
    %17 = vector.shape_cast %16 : vector<1x32xf32> to vector<32xf32>
    %18 = vector.shape_cast %17 : vector<32xf32> to vector<1x32xf32>
    %19 = vector.broadcast %18 : vector<1x32xf32> to vector<8x32xf32>
    %20 = arith.addf %15, %19 : vector<8x32xf32>
    %c0_15 = arith.constant 0 : index
    %c0_16 = arith.constant 0 : index
    %c0_17 = arith.constant 0 : index
    %21 = vector.load %arg10[%c0_15, %c0_16, %c0_17] : memref<1x8x32xf32, #tpu.memory_space<vmem>>, vector<1x8x32xf32>
    %22 = vector.shape_cast %21 : vector<1x8x32xf32> to vector<8x32xf32>
    %23 = vector.shape_cast %20 : vector<8x32xf32> to vector<1x8x32xf32>
    tpu.vector_store %arg10[%c0_15, %c0_16, %c0_17], %23 {strides = array<i32>} : memref<1x8x32xf32, #tpu.memory_space<vmem>>, vector<1x8x32xf32>,
    %c0_18 = arith.constant 0 : index
    %c0_19 = arith.constant 0 : index
    %24 = vector.load %arg7[%c0_18, %c0_19] : memref<32x32xf32, #tpu.memory_space<vmem>>, vector<32x32xf32>
    %cst_20 = arith.constant dense<0.000000e+00> : vector<8x32xf32>
    %25 = tpu.matmul %1, %24, %cst_20 {dimension_numbers = #tpu.dot_dimension_numbers<[1], [0], [0], [1], [0, 0, 1, 1], [], []>} : vector<8x32xf32>, vector<32x32xf32>, vector<8x32xf32> -> vector<8x32xf32>
    %c0_21 = arith.constant 0 : index
    %c0_22 = arith.constant 0 : index
    %26 = vector.load %arg8[%c0_21, %c0_22] : memref<1x32xf32, #tpu.memory_space<vmem>>, vector<1x32xf32>
    %27 = vector.shape_cast %26 : vector<1x32xf32> to vector<32xf32>
    %28 = vector.shape_cast %27 : vector<32xf32> to vector<1x32xf32>
    %29 = vector.broadcast %28 : vector<1x32xf32> to vector<8x32xf32>
    %30 = arith.addf %25, %29 : vector<8x32xf32>
    %c0_23 = arith.constant 0 : index
    %c0_24 = arith.constant 0 : index
    %c0_25 = arith.constant 0 : index
    %31 = vector.load %arg11[%c0_23, %c0_24, %c0_25] : memref<1x8x32xf32, #tpu.memory_space<vmem>>, vector<1x8x32xf32>
    %32 = vector.shape_cast %31 : vector<1x8x32xf32> to vector<8x32xf32>
    %33 = vector.shape_cast %30 : vector<8x32xf32> to vector<1x8x32xf32>
    tpu.vector_store %arg11[%c0_23, %c0_24, %c0_25], %33 {strides = array<i32>} : memref<1x8x32xf32, #tpu.memory_space<vmem>>, vector<1x8x32xf32>,
    return
  }
  func.func @transform_0(%arg0: i32, %arg1: i32) -> (i32, i32, i32) {
    %c0_i32 = arith.constant 0 : i32
    %c0_i32_0 = arith.constant 0 : i32
    return %arg0, %arg1, %c0_i32 : i32, i32, i32
  }
  func.func @transform_1(%arg0: i32, %arg1: i32) -> (i32, i32) {
    %c0_i32 = arith.constant 0 : i32
    %c0_i32_0 = arith.constant 0 : i32
    %c0_i32_1 = arith.constant 0 : i32
    return %c0_i32, %c0_i32_0 : i32, i32
  }
  func.func @transform_2(%arg0: i32, %arg1: i32) -> (i32, i32) {
    %c0_i32 = arith.constant 0 : i32
    %c0_i32_0 = arith.constant 0 : i32
    %c0_i32_1 = arith.constant 0 : i32
    return %c0_i32, %c0_i32_0 : i32, i32
  }
  func.func @transform_3(%arg0: i32, %arg1: i32) -> (i32, i32) {
    %c0_i32 = arith.constant 0 : i32
    %c0_i32_0 = arith.constant 0 : i32
    %c0_i32_1 = arith.constant 0 : i32
    return %c0_i32, %c0_i32_0 : i32, i32
  }
  func.func @transform_4(%arg0: i32, %arg1: i32) -> (i32, i32) {
    %c0_i32 = arith.constant 0 : i32
    %c0_i32_0 = arith.constant 0 : i32
    %c0_i32_1 = arith.constant 0 : i32
    return %c0_i32, %c0_i32_0 : i32, i32
  }
  func.func @transform_5(%arg0: i32, %arg1: i32) -> (i32, i32) {
    %c0_i32 = arith.constant 0 : i32
    %c0_i32_0 = arith.constant 0 : i32
    %c0_i32_1 = arith.constant 0 : i32
    return %c0_i32, %c0_i32_0 : i32, i32
  }
  func.func @transform_6(%arg0: i32, %arg1: i32) -> (i32, i32) {
    %c0_i32 = arith.constant 0 : i32
    %c0_i32_0 = arith.constant 0 : i32
    %c0_i32_1 = arith.constant 0 : i32
    return %c0_i32, %c0_i32_0 : i32, i32
  }
  func.func @transform_7(%arg0: i32, %arg1: i32) -> (i32, i32, i32) {
    %c0_i32 = arith.constant 0 : i32
    %c0_i32_0 = arith.constant 0 : i32
    return %arg0, %arg1, %c0_i32 : i32, i32, i32
  }
  func.func @transform_8(%arg0: i32, %arg1: i32) -> (i32, i32, i32) {
    %c0_i32 = arith.constant 0 : i32
    %c0_i32_0 = arith.constant 0 : i32
    return %arg0, %arg1, %c0_i32 : i32, i32, i32
  }
  func.func @transform_9(%arg0: i32, %arg1: i32) -> (i32, i32, i32) {
    %c0_i32 = arith.constant 0 : i32
    %c0_i32_0 = arith.constant 0 : i32
    return %arg0, %arg1, %c0_i32 : i32, i32, i32
  }
}

</mosaic_0001>

<llo_original>
// kernel: tpu_custom_call.1
$region0: #{tpu_custom_call.1}
  #allocation0 [shape = 'u32[]', space=smem, size = 0x4, offset = 0x4, fixed_abs, tag = 'smem constant byte address 0x4 - core index']
  #allocation1 [shape = 'u32[144,128]{1,0:T(1,128)}', space=vmem, size = 0x12000, scoped, tag = 'internal scratch']
  %s0 = inlined_call_operand.hbm [shape: f32[2,8,32], index: 0, kind: input, shape index: {}]
  %s1 = inlined_call_operand.hbm [shape: f32[32,32], index: 1, kind: input, shape index: {}]
  %s2 = inlined_call_operand.vmem [shape: f32[1,32], index: 2, kind: input, shape index: {}]
  %s3 = inlined_call_operand.hbm [shape: f32[32,32], index: 3, kind: input, shape index: {}]
  %s4 = inlined_call_operand.vmem [shape: f32[1,32], index: 4, kind: input, shape index: {}]
  %s5 = inlined_call_operand.hbm [shape: f32[32,32], index: 5, kind: input, shape index: {}]
  %s6 = inlined_call_operand.vmem [shape: f32[1,32], index: 6, kind: input, shape index: {}]
  %s7 = inlined_call_operand.hbm [shape: f32[2,8,32], index: 7, kind: output, shape index: {0}]
  %s8 = inlined_call_operand.hbm [shape: f32[2,8,32], index: 8, kind: output, shape index: {1}]
  %s9 = inlined_call_operand.hbm [shape: f32[2,8,32], index: 9, kind: output, shape index: {2}]
  %10 = xla_tuple %s7, %s8, %s9
  %s11 = sld [smem:[#allocation0]]
  $region93: #{tpu_custom_call.1} parent=0
    _
  %s13 = ssub.s32 1, %s11
  %s14 = scalar_select 0, %s13, %s11
  $region1: #{tpu_custom_call.1} parent=0
    #allocation2 [shape = 'u8[8192]{0}', space=vmem, size = 0x2000, scoped, tag = 'input window, operand 0']
    #allocation3 [shape = 's32[2]{0}', space=sflag, size = 0x8, scoped, tag = 'scoped memory for tpu_custom_call.1']
    #allocation4 [shape = 's32[2]{0}', space=sflag, size = 0x8, scoped, tag = 'scoped memory for tpu_custom_call.1']
    #allocation5 [shape = 'u8[16384]{0}', space=vmem, size = 0x4000, scoped, tag = 'input window, operand 1, single buffered']
    #allocation6 [shape = 's32[1]{0}', space=sflag, size = 0x4, scoped, tag = 'scoped memory for tpu_custom_call.1']
    #allocation7 [shape = 'u8[16384]{0}', space=vmem, size = 0x4000, scoped, tag = 'input window, operand 3, single buffered']
    #allocation8 [shape = 'u8[16384]{0}', space=vmem, size = 0x4000, scoped, tag = 'input window, operand 5, single buffered']
    #allocation9 [shape = 's32[1]{0}', space=sflag, size = 0x4, scoped, tag = 'scoped memory for tpu_custom_call.1']
    #allocation10 [shape = 'u8[8192]{0}', space=vmem, size = 0x2000, scoped, tag = 'output window, operand 0']
    #allocation11 [shape = 'u8[8192]{0}', space=vmem, size = 0x2000, scoped, tag = 'output window, operand 1']
    #allocation12 [shape = 's32[2]{0}', space=sflag, size = 0x8, scoped, tag = 'scoped memory for tpu_custom_call.1']
    #allocation13 [shape = 'u8[8192]{0}', space=vmem, size = 0x2000, scoped, tag = 'output window, operand 2']
    %15 = vsyncpa [#allocation3], 0
    %s16 = scalar_lea.sflag [#allocation3], 1
    %17 = vsyncpa %s16, 0
    %18 = vsyncpa [#allocation6], 0
    %19 = vsyncpa [#allocation9], 0
    %20 = vsyncpa [#allocation4], 0
    %s21 = scalar_lea.sflag [#allocation4], 1
    %22 = vsyncpa %s21, 0
    %23 = vsyncpa [#allocation12], 0
    %s24 = scalar_lea.sflag [#allocation12], 1
    %25 = vsyncpa %s24, 0
    loop: start=0, step=1, limit=4
    $region2: #{tpu_custom_call.1} parent=1 // loop_pre_header
      _
    $region3: #{tpu_custom_call.1} parent=1 // loop_header
      %s27 = sphi 0, %s31
      %p28 = scmp.ge.s32.totalorder %s27, 4
      %s34 = sphi 0, %s46
      %s35 = sphi 0, %s42
      %s36 = sphi 0, %s34
      %s37 = sphi 0, %s35
      %s38 = sphi 0, %s36
      %s39 = sphi 0, %s37
      %s51 = sphi 0, %s53
      %s54 = sphi 0, %s51
      %s55 = sphi 0, %s54
      %s71 = sphi 0, %s55
      %s75 = sphi 0, %s75
      %s77 = sphi 0, %s75
      %s78 = sphi 0, %s77
      %s92 = sphi 0, %s78
      %s96 = sphi 0, %s96
      %s98 = sphi 0, %s96
      %s99 = sphi 0, %s98
      %s113 = sphi 0, %s99
      %s117 = sphi 0, %s117
      %s119 = sphi 0, %s117
      %s120 = sphi 0, %s119
      %s134 = sphi 0, %s120
      %s138 = sphi 0, %s138
      %s140 = sphi 0, %s138
      %s141 = sphi 0, %s140
      %s155 = sphi 0, %s141
      %s159 = sphi 0, %s159
      %s161 = sphi 0, %s159
      %s162 = sphi 0, %s161
      %s176 = sphi 0, %s162
      %s180 = sphi 0, %s180
      %s182 = sphi 0, %s180
      %s183 = sphi 0, %s182
      %s197 = sphi 0, %s183
      %s205 = sphi 0, %s207
      %s208 = sphi 0, %s205
      %s209 = sphi 0, %s208
      %s225 = sphi 0, %s209
      %s233 = sphi 0, %s235
      %s236 = sphi 0, %s233
      %s237 = sphi 0, %s236
      %s253 = sphi 0, %s237
      %s261 = sphi 0, %s263
      %s264 = sphi 0, %s261
      %s265 = sphi 0, %s264
      %s281 = sphi 0, %s265
    $region4: #{tpu_custom_call.1} parent=1 // loop_header_branch
      %30 = sbr.rel (%p28) target = $region8
    $region5: #{tpu_custom_call.1} parent=1 // loop_body
      %s32 = ssub.s32 %s27, 1
      %s33 = ssub.s32 %s27, 2
      %s40 = sadd.s32 1, %s35
      %p41 = scmp.ge.s32.totalorder %s40, 1
      %s42 = scalar_select %p41, 0, %s40
      %s43 = sadd.s32 1, %s34
      %s44 = scalar_select %p41, %s43, %s34
      %p45 = scmp.ge.s32.totalorder %s44, 2
      %s46 = scalar_select %p45, 0, %s44
      %s47 = ssub.s32 %s34, %s46
      %s48 = ssub.s32 %s35, %s42
      %s49 = sor.u32 %s47, %s48
      %p50 = scmp.eq.s32.totalorder %s49, 0
      %s52 = sadd.s32 %s51, 1
      %s53 = scalar_select %p50, %s51, %s52
      %p56 = pneg %p50
      %p57 = scmp.eq.s32.totalorder %s27, 1
      %p58 = por %p56, %p57
      %p59 = scmp.ne.s32.totalorder %s51, %s54
      %p60 = scmp.eq.s32.totalorder %s27, 0
      %p61 = por %p59, %p60
      %p62 = scmp.ne.s32.totalorder %s51, %s54
      %p63 = scmp.eq.s32.totalorder %s32, 1
      %p64 = por %p62, %p63
      %p65 = scmp.ne.s32.totalorder %s54, %s55
      %p66 = scmp.eq.s32.totalorder %s32, 0
      %p67 = por %p65, %p66
      %p68 = scmp.ne.s32.totalorder %s54, %s55
      %p69 = scmp.eq.s32.totalorder %s33, 1
      %p70 = por %p68, %p69
      %p72 = scmp.ne.s32.totalorder %s55, %s71
      %p73 = scmp.eq.s32.totalorder %s33, 0
      %p74 = por %p72, %p73
      %s76 = sadd.s32 %s75, 1
      %p79 = scmp.eq.s32.totalorder %s27, 1
      %p80 = scmp.ne.s32.totalorder %s75, %s77
      %p81 = scmp.eq.s32.totalorder %s27, 0
      %p82 = por %p80, %p81
      %p83 = scmp.ne.s32.totalorder %s75, %s77
      %p84 = scmp.eq.s32.totalorder %s32, 1
      %p85 = por %p83, %p84
      %p86 = scmp.ne.s32.totalorder %s77, %s78
      %p87 = scmp.eq.s32.totalorder %s32, 0
      %p88 = por %p86, %p87
      %p89 = scmp.ne.s32.totalorder %s77, %s78
      %p90 = scmp.eq.s32.totalorder %s33, 1
      %p91 = por %p89, %p90
      %p93 = scmp.ne.s32.totalorder %s78, %s92
      %p94 = scmp.eq.s32.totalorder %s33, 0
      %p95 = por %p93, %p94
      %s97 = sadd.s32 %s96, 1
      %p100 = scmp.eq.s32.totalorder %s27, 1
      %p101 = scmp.ne.s32.totalorder %s96, %s98
      %p102 = scmp.eq.s32.totalorder %s27, 0
      %p103 = por %p101, %p102
      %p104 = scmp.ne.s32.totalorder %s96, %s98
      %p105 = scmp.eq.s32.totalorder %s32, 1
      %p106 = por %p104, %p105
      %p107 = scmp.ne.s32.totalorder %s98, %s99
      %p108 = scmp.eq.s32.totalorder %s32, 0
      %p109 = por %p107, %p108
      %p110 = scmp.ne.s32.totalorder %s98, %s99
      %p111 = scmp.eq.s32.totalorder %s33, 1
      %p112 = por %p110, %p111
      %p114 = scmp.ne.s32.totalorder %s99, %s113
      %p115 = scmp.eq.s32.totalorder %s33, 0
      %p116 = por %p114, %p115
      %s118 = sadd.s32 %s117, 1
      %p121 = scmp.eq.s32.totalorder %s27, 1
      %p122 = scmp.ne.s32.totalorder %s117, %s119
      %p123 = scmp.eq.s32.totalorder %s27, 0
      %p124 = por %p122, %p123
      %p125 = scmp.ne.s32.totalorder %s117, %s119
      %p126 = scmp.eq.s32.totalorder %s32, 1
      %p127 = por %p125, %p126
      %p128 = scmp.ne.s32.totalorder %s119, %s120
      %p129 = scmp.eq.s32.totalorder %s32, 0
      %p130 = por %p128, %p129
      %p131 = scmp.ne.s32.totalorder %s119, %s120
      %p132 = scmp.eq.s32.totalorder %s33, 1
      %p133 = por %p131, %p132
      %p135 = scmp.ne.s32.totalorder %s120, %s134
      %p136 = scmp.eq.s32.totalorder %s33, 0
      %p137 = por %p135, %p136
      %s139 = sadd.s32 %s138, 1
      %p142 = scmp.eq.s32.totalorder %s27, 1
      %p143 = scmp.ne.s32.totalorder %s138, %s140
      %p144 = scmp.eq.s32.totalorder %s27, 0
      %p145 = por %p143, %p144
      %p146 = scmp.ne.s32.totalorder %s138, %s140
      %p147 = scmp.eq.s32.totalorder %s32, 1
      %p148 = por %p146, %p147
      %p149 = scmp.ne.s32.totalorder %s140, %s141
      %p150 = scmp.eq.s32.totalorder %s32, 0
      %p151 = por %p149, %p150
      %p152 = scmp.ne.s32.totalorder %s140, %s141
      %p153 = scmp.eq.s32.totalorder %s33, 1
      %p154 = por %p152, %p153
      %p156 = scmp.ne.s32.totalorder %s141, %s155
      %p157 = scmp.eq.s32.totalorder %s33, 0
      %p158 = por %p156, %p157
      %s160 = sadd.s32 %s159, 1
      %p163 = scmp.eq.s32.totalorder %s27, 1
      %p164 = scmp.ne.s32.totalorder %s159, %s161
      %p165 = scmp.eq.s32.totalorder %s27, 0
      %p166 = por %p164, %p165
      %p167 = scmp.ne.s32.totalorder %s159, %s161
      %p168 = scmp.eq.s32.totalorder %s32, 1
      %p169 = por %p167, %p168
      %p170 = scmp.ne.s32.totalorder %s161, %s162
      %p171 = scmp.eq.s32.totalorder %s32, 0
      %p172 = por %p170, %p171
      %p173 = scmp.ne.s32.totalorder %s161, %s162
      %p174 = scmp.eq.s32.totalorder %s33, 1
      %p175 = por %p173, %p174
      %p177 = scmp.ne.s32.totalorder %s162, %s176
      %p178 = scmp.eq.s32.totalorder %s33, 0
      %p179 = por %p177, %p178
      %s181 = sadd.s32 %s180, 1
      %p184 = scmp.eq.s32.totalorder %s27, 1
      %p185 = scmp.ne.s32.totalorder %s180, %s182
      %p186 = scmp.eq.s32.totalorder %s27, 0
      %p187 = por %p185, %p186
      %p188 = scmp.ne.s32.totalorder %s180, %s182
      %p189 = scmp.eq.s32.totalorder %s32, 1
      %p190 = por %p188, %p189
      %p191 = scmp.ne.s32.totalorder %s182, %s183
      %p192 = scmp.eq.s32.totalorder %s32, 0
      %p193 = por %p191, %p192
      %p194 = scmp.ne.s32.totalorder %s182, %s183
      %p195 = scmp.eq.s32.totalorder %s33, 1
      %p196 = por %p194, %p195
      %p198 = scmp.ne.s32.totalorder %s183, %s197
      %p199 = scmp.eq.s32.totalorder %s33, 0
      %p200 = por %p198, %p199
      %s201 = ssub.s32 %s34, %s46
      %s202 = ssub.s32 %s35, %s42
      %s203 = sor.u32 %s201, %s202
      %p204 = scmp.eq.s32.totalorder %s203, 0
      %s206 = sadd.s32 %s205, 1
      %s207 = scalar_select %p204, %s205, %s206
      %p210 = pneg %p204
      %p211 = scmp.eq.s32.totalorder %s27, 1
      %p212 = por %p210, %p211
      %p213 = scmp.ne.s32.totalorder %s205, %s208
      %p214 = scmp.eq.s32.totalorder %s27, 0
      %p215 = por %p213, %p214
      %p216 = scmp.ne.s32.totalorder %s205, %s208
      %p217 = scmp.eq.s32.totalorder %s32, 1
      %p218 = por %p216, %p217
      %p219 = scmp.ne.s32.totalorder %s208, %s209
      %p220 = scmp.eq.s32.totalorder %s32, 0
      %p221 = por %p219, %p220
      %p222 = scmp.ne.s32.totalorder %s208, %s209
      %p223 = scmp.eq.s32.totalorder %s33, 1
      %p224 = por %p222, %p223
      %p226 = scmp.ne.s32.totalorder %s209, %s225
      %p227 = scmp.eq.s32.totalorder %s33, 0
      %p228 = por %p226, %p227
      %s229 = ssub.s32 %s34, %s46
      %s230 = ssub.s32 %s35, %s42
      %s231 = sor.u32 %s229, %s230
      %p232 = scmp.eq.s32.totalorder %s231, 0
      %s234 = sadd.s32 %s233, 1
      %s235 = scalar_select %p232, %s233, %s234
      %p238 = pneg %p232
      %p239 = scmp.eq.s32.totalorder %s27, 1
      %p240 = por %p238, %p239
      %p241 = scmp.ne.s32.totalorder %s233, %s236
      %p242 = scmp.eq.s32.totalorder %s27, 0
      %p243 = por %p241, %p242
      %p244 = scmp.ne.s32.totalorder %s233, %s236
      %p245 = scmp.eq.s32.totalorder %s32, 1
      %p246 = por %p244, %p245
      %p247 = scmp.ne.s32.totalorder %s236, %s237
      %p248 = scmp.eq.s32.totalorder %s32, 0
      %p249 = por %p247, %p248
      %p250 = scmp.ne.s32.totalorder %s236, %s237
      %p251 = scmp.eq.s32.totalorder %s33, 1
      %p252 = por %p250, %p251
      %p254 = scmp.ne.s32.totalorder %s237, %s253
      %p255 = scmp.eq.s32.totalorder %s33, 0
      %p256 = por %p254, %p255
      %s257 = ssub.s32 %s34, %s46
      %s258 = ssub.s32 %s35, %s42
      %s259 = sor.u32 %s257, %s258
      %p260 = scmp.eq.s32.totalorder %s259, 0
      %s262 = sadd.s32 %s261, 1
      %s263 = scalar_select %p260, %s261, %s262
      %p266 = pneg %p260
      %p267 = scmp.eq.s32.totalorder %s27, 1
      %p268 = por %p266, %p267
      %p269 = scmp.ne.s32.totalorder %s261, %s264
      %p270 = scmp.eq.s32.totalorder %s27, 0
      %p271 = por %p269, %p270
      %p272 = scmp.ne.s32.totalorder %s261, %s264
      %p273 = scmp.eq.s32.totalorder %s32, 1
      %p274 = por %p272, %p273
      %p275 = scmp.ne.s32.totalorder %s264, %s265
      %p276 = scmp.eq.s32.totalorder %s32, 0
      %p277 = por %p275, %p276
      %p278 = scmp.ne.s32.totalorder %s264, %s265
      %p279 = scmp.eq.s32.totalorder %s33, 1
      %p280 = por %p278, %p279
      %p282 = scmp.ne.s32.totalorder %s265, %s281
      %p283 = scmp.eq.s32.totalorder %s33, 0
      %p284 = por %p282, %p283
      %p285 = scmp.le.s32.totalorder 1, %s27
      %p286 = scmp.lt.s32.totalorder %s27, 3
      %p287 = pnand %p285, %p286
      %p288 = pneg %p287
      // Predicated region
      $region9: #{tpu_custom_call.1} parent=5 // pred_check
        _
      $region10: #{tpu_custom_call.1} parent=5 // pred_check_branch
        %290 = sbr.rel (%p287) target = $region12
      $region11: #{tpu_custom_call.1} parent=5 // pred_region
        %s291 = ssub.s32 %s27, 1
        // Predicated region
        $region13: #{tpu_custom_call.1} parent=11 // pred_check
          %p292 = pneg %p88
        $region14: #{tpu_custom_call.1} parent=11 // pred_check_branch
          %294 = sbr.rel (%p292) target = $region16
        $region15: #{tpu_custom_call.1} parent=11 // pred_region
          %s296 = ssub.s32 512, 512
          %297 = vsyncadd [#allocation6], %s296
          %s298 = sshll.u32 [#allocation5], 4
          %s299 = int_to_ptr.vmem [resolvable:$true] %s298
          %304 = dma.hbm_to_vmem [thread:$0]  %s1, 512, %s299, [#allocation6], 128, 128, 8
        $region16: #{tpu_custom_call.1} parent=11 // pred_fallthru
          _
        // Predicated region
        $region17: #{tpu_custom_call.1} parent=11 // pred_check
          %p305 = pneg %p109
        $region18: #{tpu_custom_call.1} parent=11 // pred_check_branch
          %307 = sbr.rel (%p305) target = $region20
        $region19: #{tpu_custom_call.1} parent=11 // pred_region
          _
        $region20: #{tpu_custom_call.1} parent=11 // pred_fallthru
          _
        // Predicated region
        $region21: #{tpu_custom_call.1} parent=11 // pred_check
          %p308 = pneg %p130
        $region22: #{tpu_custom_call.1} parent=11 // pred_check_branch
          %310 = sbr.rel (%p308) target = $region24
        $region23: #{tpu_custom_call.1} parent=11 // pred_region
          %s312 = ssub.s32 512, 512
          %313 = vsyncadd [#allocation6], %s312
          %s314 = sshll.u32 [#allocation7], 4
          %s315 = int_to_ptr.vmem [resolvable:$true] %s314
          %320 = dma.hbm_to_vmem [thread:$0]  %s3, 512, %s315, [#allocation6], 128, 128, 8
        $region24: #{tpu_custom_call.1} parent=11 // pred_fallthru
          _
        // Predicated region
        $region25: #{tpu_custom_call.1} parent=11 // pred_check
          %p321 = pneg %p151
        $region26: #{tpu_custom_call.1} parent=11 // pred_check_branch
          %323 = sbr.rel (%p321) target = $region28
        $region27: #{tpu_custom_call.1} parent=11 // pred_region
          _
        $region28: #{tpu_custom_call.1} parent=11 // pred_fallthru
          _
        // Predicated region
        $region29: #{tpu_custom_call.1} parent=11 // pred_check
          %p324 = pneg %p172
        $region30: #{tpu_custom_call.1} parent=11 // pred_check_branch
          %326 = sbr.rel (%p324) target = $region32
        $region31: #{tpu_custom_call.1} parent=11 // pred_region
          %s328 = ssub.s32 512, 512
          %329 = vsyncadd [#allocation9], %s328
          %s330 = sshll.u32 [#allocation8], 4
          %s331 = int_to_ptr.vmem [resolvable:$true] %s330
          %336 = dma.hbm_to_vmem [thread:$0]  %s5, 512, %s331, [#allocation9], 128, 128, 8
        $region32: #{tpu_custom_call.1} parent=11 // pred_fallthru
          _
        // Predicated region
        $region33: #{tpu_custom_call.1} parent=11 // pred_check
          %p337 = pneg %p193
        $region34: #{tpu_custom_call.1} parent=11 // pred_check_branch
          %339 = sbr.rel (%p337) target = $region36
        $region35: #{tpu_custom_call.1} parent=11 // pred_region
          _
        $region36: #{tpu_custom_call.1} parent=11 // pred_fallthru
          _
      $region12: #{tpu_custom_call.1} parent=5 // pred_fallthru
        _
      %p340 = scmp.lt.s32.totalorder %s27, 2
      // Predicated region
      $region37: #{tpu_custom_call.1} parent=5 // pred_check
        %p341 = pneg %p340
      $region38: #{tpu_custom_call.1} parent=5 // pred_check_branch
        %343 = sbr.rel (%p341) target = $region40
      $region39: #{tpu_custom_call.1} parent=5 // pred_region
        // Predicated region
        $region41: #{tpu_custom_call.1} parent=39 // pred_check
          %p344 = pneg %p61
        $region42: #{tpu_custom_call.1} parent=39 // pred_check_branch
          %346 = sbr.rel (%p344) target = $region44
        $region43: #{tpu_custom_call.1} parent=39 // pred_region
          %s347 = sand.u32 %s51, 1
          %s348 = scalar_lea.sflag [#allocation3], %s347
          %s349 = sand.u32 %s51, 1
          %s350 = smul.addr %s349, 8
          %s351 = scalar_lea.vmem [#allocation2], %s350
          %s353 = ssub.s32 128, 128
          %354 = vsyncadd %s348, %s353
          %s355 = sadd.s32 %s35, %s34
          %s356 = smul.addr %s355, 128
          %s357 = scalar_lea.hbm %s0, %s356
          %s359 = sshll.u32 %s351, 4
          %s360 = int_to_ptr.vmem [resolvable:$true] %s359
          %362 = dma.hbm_to_vmem [thread:$0]  %s357, 128, %s360, %s348
        $region44: #{tpu_custom_call.1} parent=39 // pred_fallthru
          _
      $region40: #{tpu_custom_call.1} parent=5 // pred_fallthru
        _
      %p363 = scmp.le.s32.totalorder 1, %s27
      %p364 = scmp.lt.s32.totalorder %s27, 3
      %p365 = pnand %p363, %p364
      %p366 = pneg %p365
      // Predicated region
      $region45: #{tpu_custom_call.1} parent=5 // pred_check
        _
      $region46: #{tpu_custom_call.1} parent=5 // pred_check_branch
        %368 = sbr.rel (%p365) target = $region48
      $region47: #{tpu_custom_call.1} parent=5 // pred_region
        %s369 = ssub.s32 %s27, 1
        %s370 = sand.u32 %s54, 1
        %s371 = scalar_lea.sflag [#allocation3], %s370
        %s372 = sand.u32 %s54, 1
        %s373 = smul.addr %s372, 8
        %s374 = scalar_lea.vmem [#allocation2], %s373
        // Predicated region
        $region49: #{tpu_custom_call.1} parent=47 // pred_check
          %p375 = pneg %p67
        $region50: #{tpu_custom_call.1} parent=47 // pred_check_branch
          %377 = sbr.rel (%p375) target = $region52
        $region51: #{tpu_custom_call.1} parent=47 // pred_region
          %378 = dma.done %s371, 128
        $region52: #{tpu_custom_call.1} parent=47 // pred_fallthru
          _
        // Predicated region
        $region53: #{tpu_custom_call.1} parent=47 // pred_check
          %p379 = pneg %p88
        $region54: #{tpu_custom_call.1} parent=47 // pred_check_branch
          %381 = sbr.rel (%p379) target = $region56
        $region55: #{tpu_custom_call.1} parent=47 // pred_region
          %382 = dma.done [#allocation6], 512
        $region56: #{tpu_custom_call.1} parent=47 // pred_fallthru
          _
        // Predicated region
        $region57: #{tpu_custom_call.1} parent=47 // pred_check
          %p383 = pneg %p130
        $region58: #{tpu_custom_call.1} parent=47 // pred_check_branch
          %385 = sbr.rel (%p383) target = $region60
        $region59: #{tpu_custom_call.1} parent=47 // pred_region
          %386 = dma.done [#allocation6], 512
        $region60: #{tpu_custom_call.1} parent=47 // pred_fallthru
          _
        // Predicated region
        $region61: #{tpu_custom_call.1} parent=47 // pred_check
          %p387 = pneg %p172
        $region62: #{tpu_custom_call.1} parent=47 // pred_check_branch
          %389 = sbr.rel (%p387) target = $region64
        $region63: #{tpu_custom_call.1} parent=47 // pred_region
          %390 = dma.done [#allocation9], 512
        $region64: #{tpu_custom_call.1} parent=47 // pred_fallthru
          _
        %s391 = sand.u32 %s54, 1
        %s392 = scalar_lea.sflag [#allocation3], %s391
        %s393 = sand.u32 %s54, 1
        %s394 = smul.addr %s393, 8
        %s395 = scalar_lea.vmem [#allocation2], %s394
        %p396 = pneg %p67
        %p397 = pneg %p64
        %p398 = pneg %p88
        %p399 = pneg %p85
        %p400 = pneg %p109
        %p401 = pneg %p106
        %p402 = pneg %p130
        %p403 = pneg %p127
        %p404 = pneg %p151
        %p405 = pneg %p148
        %p406 = pneg %p172
        %p407 = pneg %p169
        %p408 = pneg %p193
        %p409 = pneg %p190
        %p410 = pneg %p221
        %p411 = pneg %p218
        %s412 = sand.u32 %s208, 1
        %s413 = scalar_lea.sflag [#allocation4], %s412
        %s414 = sand.u32 %s208, 1
        %s415 = smul.addr %s414, 8
        %s416 = scalar_lea.vmem [#allocation10], %s415
        %p417 = pneg %p249
        %p418 = pneg %p246
        %s419 = sand.u32 %s32, 1
        %s420 = scalar_lea.sflag [#allocation12], %s419
        %s421 = sand.u32 %s236, 1
        %s422 = smul.addr %s421, 8
        %s423 = scalar_lea.vmem [#allocation11], %s422
        %p424 = pneg %p277
        %p425 = pneg %p274
        %s426 = sand.u32 %s32, 1
        %s427 = scalar_lea.sflag [#allocation12], %s426
        %s428 = sand.u32 %s264, 1
        %s429 = smul.addr %s428, 8
        %s430 = scalar_lea.vmem [#allocation13], %s429
        %v431 = vld [vmem:[%s374] sm:$0xff]
        %v432 = vld [vmem:[#allocation5] sm:$0xff]
        %v433 = vld [vmem:[#allocation5 + $0x8] sm:$0xff]
        %v434 = vld [vmem:[#allocation5 + $0x10] sm:$0xff]
        %v435 = vld [vmem:[#allocation5 + $0x18] sm:$0xff]
        %v436 = vld [vmem:[%s2] sm:$0x1]
        %v438 = vlaneseq
        %v439 = vshrl.u32 %v438, 7
        %v440 = vsub.s32 0, %v439
        %v441 = vrot.slane %v436, %v440
        %vm443 = vcmask 261120
        %v445 = vsel %vm443, %v431, 0
        %447 = vmatprep.subr.mxu0 0.0
        %448 = vmatpush1.msra.mxu0 0.0
        %449 = vmatprep.subr.mxu0 0.0
        %450 = vmatpush1.msra.mxu0 0.0
        %451 = vmatprep.subr.mxu0 0.0
        %452 = vmatpush1.msra.mxu0 0.0
        %453 = vmatprep.subr.mxu0 0.0
        %454 = vmatpush1.msra.mxu0 0.0
        %455 = vmatprep.subr.mxu0 0.0
        %456 = vmatpush1.msra.mxu0 0.0
        %457 = vmatprep.subr.mxu0 0.0
        %458 = vmatpush1.msra.mxu0 0.0
        %459 = vmatprep.subr.mxu0 0.0
        %460 = vmatpush1.msra.mxu0 0.0
        %461 = vmatprep.subr.mxu0 0.0
        %462 = vmatpush1.msra.mxu0 0.0
        %463 = vmatprep.subr.mxu0 0.0
        %464 = vmatpush1.msra.mxu0 0.0
        %465 = vmatprep.subr.mxu0 0.0
        %466 = vmatpush1.msra.mxu0 0.0
        %467 = vmatprep.subr.mxu0 0.0
        %468 = vmatpush1.msra.mxu0 0.0
        %469 = vmatprep.subr.mxu0 0.0
        %470 = vmatpush1.msra.mxu0 0.0
        %471 = vmatprep.subr.mxu0 0.0
        %472 = vmatpush1.msra.mxu0 %v435
        %473 = vmatprep.subr.mxu0 0.0
        %474 = vmatpush1.msra.mxu0 %v434
        %475 = vmatprep.subr.mxu0 0.0
        %476 = vmatpush1.msra.mxu0 %v433
        %477 = vmatprep.subr.mxu0 0.0
        %478 = vmatpush1.msra.mxu0 %v432
        %479 = vmatprep.subr.mxu0 0.0
        %480 = vmatpush2.msra.mxu0 0.0
        %481 = vmatprep.subr.mxu0 0.0
        %482 = vmatpush2.msra.mxu0 0.0
        %483 = vmatprep.subr.mxu0 0.0
        %484 = vmatpush2.msra.mxu0 0.0
        %485 = vmatprep.subr.mxu0 0.0
        %486 = vmatpush2.msra.mxu0 0.0
        %487 = vmatprep.subr.mxu0 0.0
        %488 = vmatpush2.msra.mxu0 0.0
        %489 = vmatprep.subr.mxu0 0.0
        %490 = vmatpush2.msra.mxu0 0.0
        %491 = vmatprep.subr.mxu0 0.0
        %492 = vmatpush2.msra.mxu0 0.0
        %493 = vmatprep.subr.mxu0 0.0
        %494 = vmatpush2.msra.mxu0 0.0
        %495 = vmatprep.subr.mxu0 0.0
        %496 = vmatpush2.msra.mxu0 0.0
        %497 = vmatprep.subr.mxu0 0.0
        %498 = vmatpush2.msra.mxu0 0.0
        %499 = vmatprep.subr.mxu0 0.0
        %500 = vmatpush2.msra.mxu0 0.0
        %501 = vmatprep.subr.mxu0 0.0
        %502 = vmatpush2.msra.mxu0 0.0
        %503 = vmatprep.subr.mxu0 0.0
        %504 = vmatpush2.msra.mxu0 0.0
        %505 = vmatprep.subr.mxu0 0.0
        %506 = vmatpush2.msra.mxu0 0.0
        %507 = vmatprep.subr.mxu0 0.0
        %508 = vmatpush2.msra.mxu0 0.0
        %509 = vmatprep.subr.mxu0 0.0
        %510 = vmatpush2.msra.mxu0 0.0
        %511 = vmatprep.mubr.f32.mxu0 0.0
        %512 = vmatmul.mubr.f32.gmra.mxu0 %v445
        %v513 = vpop.f32.mrf.mxu0
        %v514 = vadd.f32 %v441, %v513
        %v515 = vpop.f32.mrf.mxu0
        %516 = vdwg.mxu0
        %v517 = vmul.f32 %v514, 0.35355338
        %518 = vst.msk [vmem:[%s416] sm:$0xff] %vm443, %v517
        %v519 = vld [vmem:[#allocation7] sm:$0xff]
        %v520 = vld [vmem:[#allocation7 + $0x8] sm:$0xff]
        %v521 = vld [vmem:[#allocation7 + $0x10] sm:$0xff]
        %v522 = vld [vmem:[#allocation7 + $0x18] sm:$0xff]
        %v523 = vld [vmem:[%s4] sm:$0x1]
        %v525 = vlaneseq
        %v526 = vshrl.u32 %v525, 7
        %v527 = vsub.s32 0, %v526
        %v528 = vrot.slane %v523, %v527
        %530 = vmatprep.subr.mxu0 0.0
        %531 = vmatpush1.msra.mxu0 0.0
        %532 = vmatprep.subr.mxu0 0.0
        %533 = vmatpush1.msra.mxu0 0.0
        %534 = vmatprep.subr.mxu0 0.0
        %535 = vmatpush1.msra.mxu0 0.0
        %536 = vmatprep.subr.mxu0 0.0
        %537 = vmatpush1.msra.mxu0 0.0
        %538 = vmatprep.subr.mxu0 0.0
        %539 = vmatpush1.msra.mxu0 0.0
        %540 = vmatprep.subr.mxu0 0.0
        %541 = vmatpush1.msra.mxu0 0.0
        %542 = vmatprep.subr.mxu0 0.0
        %543 = vmatpush1.msra.mxu0 0.0
        %544 = vmatprep.subr.mxu0 0.0
        %545 = vmatpush1.msra.mxu0 0.0
        %546 = vmatprep.subr.mxu0 0.0
        %547 = vmatpush1.msra.mxu0 0.0
        %548 = vmatprep.subr.mxu0 0.0
        %549 = vmatpush1.msra.mxu0 0.0
        %550 = vmatprep.subr.mxu0 0.0
        %551 = vmatpush1.msra.mxu0 0.0
        %552 = vmatprep.subr.mxu0 0.0
        %553 = vmatpush1.msra.mxu0 0.0
        %554 = vmatprep.subr.mxu0 0.0
        %555 = vmatpush1.msra.mxu0 %v522
        %556 = vmatprep.subr.mxu0 0.0
        %557 = vmatpush1.msra.mxu0 %v521
        %558 = vmatprep.subr.mxu0 0.0
        %559 = vmatpush1.msra.mxu0 %v520
        %560 = vmatprep.subr.mxu0 0.0
        %561 = vmatpush1.msra.mxu0 %v519
        %562 = vmatprep.subr.mxu0 0.0
        %563 = vmatpush2.msra.mxu0 0.0
        %564 = vmatprep.subr.mxu0 0.0
        %565 = vmatpush2.msra.mxu0 0.0
        %566 = vmatprep.subr.mxu0 0.0
        %567 = vmatpush2.msra.mxu0 0.0
        %568 = vmatprep.subr.mxu0 0.0
        %569 = vmatpush2.msra.mxu0 0.0
        %570 = vmatprep.subr.mxu0 0.0
        %571 = vmatpush2.msra.mxu0 0.0
        %572 = vmatprep.subr.mxu0 0.0
        %573 = vmatpush2.msra.mxu0 0.0
        %574 = vmatprep.subr.mxu0 0.0
        %575 = vmatpush2.msra.mxu0 0.0
        %576 = vmatprep.subr.mxu0 0.0
        %577 = vmatpush2.msra.mxu0 0.0
        %578 = vmatprep.subr.mxu0 0.0
        %579 = vmatpush2.msra.mxu0 0.0
        %580 = vmatprep.subr.mxu0 0.0
        %581 = vmatpush2.msra.mxu0 0.0
        %582 = vmatprep.subr.mxu0 0.0
        %583 = vmatpush2.msra.mxu0 0.0
        %584 = vmatprep.subr.mxu0 0.0
        %585 = vmatpush2.msra.mxu0 0.0
        %586 = vmatprep.subr.mxu0 0.0
        %587 = vmatpush2.msra.mxu0 0.0
        %588 = vmatprep.subr.mxu0 0.0
        %589 = vmatpush2.msra.mxu0 0.0
        %590 = vmatprep.subr.mxu0 0.0
        %591 = vmatpush2.msra.mxu0 0.0
        %592 = vmatprep.subr.mxu0 0.0
        %593 = vmatpush2.msra.mxu0 0.0
        %594 = vmatprep.mubr.f32.mxu0 0.0
        %595 = vmatmul.mubr.f32.gmra.mxu0 %v445
        %v596 = vpop.f32.mrf.mxu0
        %v597 = vadd.f32 %v528, %v596
        %v598 = vpop.f32.mrf.mxu0
        %599 = vdwg.mxu0
        %600 = vst.msk [vmem:[%s423] sm:$0xff] %vm443, %v597
        %v601 = vld [vmem:[#allocation8] sm:$0xff]
        %v602 = vld [vmem:[#allocation8 + $0x8] sm:$0xff]
        %v603 = vld [vmem:[#allocation8 + $0x10] sm:$0xff]
        %v604 = vld [vmem:[#allocation8 + $0x18] sm:$0xff]
        %v605 = vld [vmem:[%s6] sm:$0x1]
        %v607 = vlaneseq
        %v608 = vshrl.u32 %v607, 7
        %v609 = vsub.s32 0, %v608
        %v610 = vrot.slane %v605, %v609
        %612 = vmatprep.subr.mxu0 0.0
        %613 = vmatpush1.msra.mxu0 0.0
        %614 = vmatprep.subr.mxu0 0.0
        %615 = vmatpush1.msra.mxu0 0.0
        %616 = vmatprep.subr.mxu0 0.0
        %617 = vmatpush1.msra.mxu0 0.0
        %618 = vmatprep.subr.mxu0 0.0
        %619 = vmatpush1.msra.mxu0 0.0
        %620 = vmatprep.subr.mxu0 0.0
        %621 = vmatpush1.msra.mxu0 0.0
        %622 = vmatprep.subr.mxu0 0.0
        %623 = vmatpush1.msra.mxu0 0.0
        %624 = vmatprep.subr.mxu0 0.0
        %625 = vmatpush1.msra.mxu0 0.0
        %626 = vmatprep.subr.mxu0 0.0
        %627 = vmatpush1.msra.mxu0 0.0
        %628 = vmatprep.subr.mxu0 0.0
        %629 = vmatpush1.msra.mxu0 0.0
        %630 = vmatprep.subr.mxu0 0.0
        %631 = vmatpush1.msra.mxu0 0.0
        %632 = vmatprep.subr.mxu0 0.0
        %633 = vmatpush1.msra.mxu0 0.0
        %634 = vmatprep.subr.mxu0 0.0
        %635 = vmatpush1.msra.mxu0 0.0
        %636 = vmatprep.subr.mxu0 0.0
        %637 = vmatpush1.msra.mxu0 %v604
        %638 = vmatprep.subr.mxu0 0.0
        %639 = vmatpush1.msra.mxu0 %v603
        %640 = vmatprep.subr.mxu0 0.0
        %641 = vmatpush1.msra.mxu0 %v602
        %642 = vmatprep.subr.mxu0 0.0
        %643 = vmatpush1.msra.mxu0 %v601
        %644 = vmatprep.subr.mxu0 0.0
        %645 = vmatpush2.msra.mxu0 0.0
        %646 = vmatprep.subr.mxu0 0.0
        %647 = vmatpush2.msra.mxu0 0.0
        %648 = vmatprep.subr.mxu0 0.0
        %649 = vmatpush2.msra.mxu0 0.0
        %650 = vmatprep.subr.mxu0 0.0
        %651 = vmatpush2.msra.mxu0 0.0
        %652 = vmatprep.subr.mxu0 0.0
        %653 = vmatpush2.msra.mxu0 0.0
        %654 = vmatprep.subr.mxu0 0.0
        %655 = vmatpush2.msra.mxu0 0.0
        %656 = vmatprep.subr.mxu0 0.0
        %657 = vmatpush2.msra.mxu0 0.0
        %658 = vmatprep.subr.mxu0 0.0
        %659 = vmatpush2.msra.mxu0 0.0
        %660 = vmatprep.subr.mxu0 0.0
        %661 = vmatpush2.msra.mxu0 0.0
        %662 = vmatprep.subr.mxu0 0.0
        %663 = vmatpush2.msra.mxu0 0.0
        %664 = vmatprep.subr.mxu0 0.0
        %665 = vmatpush2.msra.mxu0 0.0
        %666 = vmatprep.subr.mxu0 0.0
        %667 = vmatpush2.msra.mxu0 0.0
        %668 = vmatprep.subr.mxu0 0.0
        %669 = vmatpush2.msra.mxu0 0.0
        %670 = vmatprep.subr.mxu0 0.0
        %671 = vmatpush2.msra.mxu0 0.0
        %672 = vmatprep.subr.mxu0 0.0
        %673 = vmatpush2.msra.mxu0 0.0
        %674 = vmatprep.subr.mxu0 0.0
        %675 = vmatpush2.msra.mxu0 0.0
        %676 = vmatprep.mubr.f32.mxu0 0.0
        %677 = vmatmul.mubr.f32.gmra.mxu0 %v445
        %v678 = vpop.f32.mrf.mxu0
        %v679 = vadd.f32 %v610, %v678
        %v680 = vpop.f32.mrf.mxu0
        %681 = vdwg.mxu0
        %682 = vst.msk [vmem:[%s430] sm:$0xff] %vm443, %v679
        %s683 = sand.u32 %s208, 1
        %s684 = scalar_lea.sflag [#allocation4], %s683
        %s685 = sand.u32 %s208, 1
        %s686 = smul.addr %s685, 8
        %s687 = scalar_lea.vmem [#allocation10], %s686
        %s688 = sand.u32 %s32, 1
        %s689 = scalar_lea.sflag [#allocation12], %s688
        %s690 = sand.u32 %s236, 1
        %s691 = smul.addr %s690, 8
        %s692 = scalar_lea.vmem [#allocation11], %s691
        %s693 = sand.u32 %s32, 1
        %s694 = scalar_lea.sflag [#allocation12], %s693
        %s695 = sand.u32 %s264, 1
        %s696 = smul.addr %s695, 8
        %s697 = scalar_lea.vmem [#allocation13], %s696
        // Predicated region
        $region65: #{tpu_custom_call.1} parent=47 // pred_check
          %p698 = pneg %p218
        $region66: #{tpu_custom_call.1} parent=47 // pred_check_branch
          %700 = sbr.rel (%p698) target = $region68
        $region67: #{tpu_custom_call.1} parent=47 // pred_region
          %s702 = ssub.s32 128, 128
          %703 = vsyncadd %s684, %s702
          %s704 = sadd.s32 %s37, %s36
          %s705 = smul.addr %s704, 128
          %s706 = scalar_lea.hbm %s7, %s705
          %s708 = sshll.u32 %s687, 4
          %s709 = int_to_ptr.vmem [resolvable:$true] %s708
          %711 = dma.vmem_to_hbm [thread:$0]  %s709, 128, %s706, %s684
        $region68: #{tpu_custom_call.1} parent=47 // pred_fallthru
          _
        // Predicated region
        $region69: #{tpu_custom_call.1} parent=47 // pred_check
          %p712 = pneg %p246
        $region70: #{tpu_custom_call.1} parent=47 // pred_check_branch
          %714 = sbr.rel (%p712) target = $region72
        $region71: #{tpu_custom_call.1} parent=47 // pred_region
          %s716 = ssub.s32 128, 128
          %717 = vsyncadd %s689, %s716
          %s718 = sadd.s32 %s37, %s36
          %s719 = smul.addr %s718, 128
          %s720 = scalar_lea.hbm %s8, %s719
          %s722 = sshll.u32 %s692, 4
          %s723 = int_to_ptr.vmem [resolvable:$true] %s722
          %725 = dma.vmem_to_hbm [thread:$0]  %s723, 128, %s720, %s689
        $region72: #{tpu_custom_call.1} parent=47 // pred_fallthru
          _
        // Predicated region
        $region73: #{tpu_custom_call.1} parent=47 // pred_check
          %p726 = pneg %p274
        $region74: #{tpu_custom_call.1} parent=47 // pred_check_branch
          %728 = sbr.rel (%p726) target = $region76
        $region75: #{tpu_custom_call.1} parent=47 // pred_region
          %s730 = ssub.s32 128, 128
          %731 = vsyncadd %s694, %s730
          %s732 = sadd.s32 %s37, %s36
          %s733 = smul.addr %s732, 128
          %s734 = scalar_lea.hbm %s9, %s733
          %s736 = sshll.u32 %s697, 4
          %s737 = int_to_ptr.vmem [resolvable:$true] %s736
          %739 = dma.vmem_to_hbm [thread:$0]  %s737, 128, %s734, %s694
        $region76: #{tpu_custom_call.1} parent=47 // pred_fallthru
          _
      $region48: #{tpu_custom_call.1} parent=5 // pred_fallthru
        _
      %p740 = scmp.le.s32.totalorder 2, %s27
      // Predicated region
      $region77: #{tpu_custom_call.1} parent=5 // pred_check
        %p741 = pneg %p740
      $region78: #{tpu_custom_call.1} parent=5 // pred_check_branch
        %743 = sbr.rel (%p741) target = $region80
      $region79: #{tpu_custom_call.1} parent=5 // pred_region
        %s744 = ssub.s32 %s27, 2
        // Predicated region
        $region81: #{tpu_custom_call.1} parent=79 // pred_check
          %p745 = pneg %p224
        $region82: #{tpu_custom_call.1} parent=79 // pred_check_branch
          %747 = sbr.rel (%p745) target = $region84
        $region83: #{tpu_custom_call.1} parent=79 // pred_region
          %s748 = sand.u32 %s209, 1
          %s749 = scalar_lea.sflag [#allocation4], %s748
          %s750 = sand.u32 %s209, 1
          %s751 = smul.addr %s750, 8
          %s752 = scalar_lea.vmem [#allocation10], %s751
          %753 = dma.done %s749, 128
        $region84: #{tpu_custom_call.1} parent=79 // pred_fallthru
          _
        // Predicated region
        $region85: #{tpu_custom_call.1} parent=79 // pred_check
          %p754 = pneg %p252
        $region86: #{tpu_custom_call.1} parent=79 // pred_check_branch
          %756 = sbr.rel (%p754) target = $region88
        $region87: #{tpu_custom_call.1} parent=79 // pred_region
          %s757 = sand.u32 %s33, 1
          %s758 = scalar_lea.sflag [#allocation12], %s757
          %s759 = sand.u32 %s237, 1
          %s760 = smul.addr %s759, 8
          %s761 = scalar_lea.vmem [#allocation11], %s760
          %762 = dma.done %s758, 128
        $region88: #{tpu_custom_call.1} parent=79 // pred_fallthru
          _
        // Predicated region
        $region89: #{tpu_custom_call.1} parent=79 // pred_check
          %p763 = pneg %p280
        $region90: #{tpu_custom_call.1} parent=79 // pred_check_branch
          %765 = sbr.rel (%p763) target = $region92
        $region91: #{tpu_custom_call.1} parent=79 // pred_region
          %s766 = sand.u32 %s33, 1
          %s767 = scalar_lea.sflag [#allocation12], %s766
          %s768 = sand.u32 %s265, 1
          %s769 = smul.addr %s768, 8
          %s770 = scalar_lea.vmem [#allocation13], %s769
          %771 = dma.done %s767, 128
        $region92: #{tpu_custom_call.1} parent=79 // pred_fallthru
          _
      $region80: #{tpu_custom_call.1} parent=5 // pred_fallthru
        _
    $region6: #{tpu_custom_call.1} parent=1 // loop_footer
      %s31 = sadd.s32 1, %s27
    $region7: #{tpu_custom_call.1} parent=1 // loop_footer_branch
      %26 = sbr.rel target = $region3
    $region8: #{tpu_custom_call.1} parent=1 // loop_exit
      _
    %772 = vsyncpa [#allocation3], 1
    %s773 = scalar_lea.sflag [#allocation3], 1
    %774 = vsyncpa %s773, 1
    %775 = vsyncpa [#allocation6], 1
    %776 = vsyncpa [#allocation9], 1
    %777 = vsyncpa [#allocation4], 1
    %s778 = scalar_lea.sflag [#allocation4], 1
    %779 = vsyncpa %s778, 1
    %780 = vsyncpa [#allocation12], 1
    %s781 = scalar_lea.sflag [#allocation12], 1
    %782 = vsyncpa %s781, 1

</llo_original>
